<compile_context>
chip_gen: v7x
topology: tpu7x:2x2x1
jax: 0.10.0
libtpu: 0.0.40
codegen_flags: <defaults>
</compile_context>

<pallas_src>
import numpy as np

import jax
import jax.numpy as jnp
from jax import lax
from jax.experimental import pallas as pl
from jax.experimental.pallas import tpu as pltpu


def _rup(n, m):
    return ((n + m - 1) // m) * m


# ---------------------------------------------------------------------------- exact
# helpers (used by the pure-JAX reference only)
def _sigmoid_exact(v):
    return 1.0 / (1.0 + jnp.exp(-v))


def _swish_exact(v):
    return v * _sigmoid_exact(v)


# ----------------------------------------------------------------------------
# Pallas kernel + wrapper
# ----------------------------------------------------------------------------
def basic_block_pallas(x_ncl, P, cfg):
    """Forward pass of BasicBlock.  x_ncl: (B, C_in, L) f32 -> (B, C_out, out_len)."""
    if cfg["groups"] != 1:
        # TODO(synk): grouped conv2 (groups > 1) not implemented; demo uses groups=1.
        raise NotImplementedError("groups > 1 not supported in this kernel")

    B, Cin, L = x_ncl.shape
    Cout = cfg["out_channels"]
    mid = cfg["mid_ch"]
    K = cfg["kernel_size"]
    S = cfg["stride"] if cfg["downsample"] else 1
    C2 = Cout // 2
    is_first_block = cfg["is_first_block"]
    use_bn = cfg["use_bn"]
    downsample = cfg["downsample"]

    # ---- static geometry (matches MyConv1dPadSame / MyMaxPool1dPadSame) --------
    out_len = -(-L // S)                                  # ceil(L / S)
    p_conv = max(0, (out_len - 1) * S + K - L)
    lc = p_conv // 2
    pp = max(0, S - 1)                                    # max-pool "same" pad
    lp = pp // 2

    out_len_p = _rup(out_len, 8)                          # sublane-align rows
    needs_row_mask = out_len_p != out_len

    KCin, KMid = K * Cin, K * mid
    LANE = _rup(max(KMid, KCin, Cout, mid, C2, 1), 128)   # constant-slab lane width
    Cout_pad = _rup(Cout, 128)                            # lane-dense output width

    # ---- wrapper-side (XLA, free) layout prep: im2col taps of x -----------------
    x_blc = jnp.transpose(x_ncl, (0, 2, 1)).astype(jnp.float32)      # (B, L, Cin)

    need = (out_len - 1) * S + K
    xpad = jnp.pad(x_blc, ((0, 0), (lc, max(0, need - L - lc)), (0, 0)))
    taps = [xpad[:, k:k + (out_len - 1) * S + 1:S, :] for k in range(K)]
    xcol = jnp.concatenate(taps, axis=-1) if K > 1 else taps[0]      # (B,out_len,K*Cin)

    # residual source (max-pool taps): when conv/pool "same" paddings agree the pool
    # taps are already the first S conv taps; otherwise append them as extra lanes.
    fuse_pool = (not downsample) or (lc == lp and K >= S)
    if fuse_pool:
        xin = xcol
        id_off = 0 if downsample else lc
    else:
        needp = (out_len - 1) * S + S
        xpp = jnp.pad(x_blc, ((0, 0), (lp, max(0, needp - L - lp)), (0, 0)))
        ptaps = [xpp[:, j:j + (out_len - 1) * S + 1:S, :] for j in range(S)]
        xid = jnp.concatenate(ptaps, axis=-1) if S > 1 else ptaps[0]
        xin = jnp.concatenate([xcol, xid], axis=-1)
        id_off = K
    GCin = xin.shape[-1]

    if needs_row_mask:
        xin = jnp.pad(xin, ((0, 0), (0, out_len_p - out_len), (0, 0)))

    # ---- fold inference-mode BN2/BN3 into conv1/conv2 ---------------------------
    if use_bn:
        w1f = P["w1"] * P["bn2_scale"][None, :]
        b1f = P["b1"] * P["bn2_scale"] + P["bn2_shift"]
        w2f = P["w2"].reshape(KMid, mid) * P["bn3_scale"][None, :]
        b2f = P["b2"] * P["bn3_scale"] + P["bn3_shift"]
    else:
        w1f, b1f = P["w1"], P["b1"]
        w2f, b2f = P["w2"].reshape(KMid, mid), P["b2"]
    # TODO(synk): for large kernel_size (Net1D uses 16) this block-diagonal conv1
    # weight is only 1/K dense; a polyphase formulation would avoid the duplication.
    w1k = jnp.kron(jnp.eye(K, dtype=jnp.float32), w1f)               # (K*Cin, K*mid)

    # conv2 "same"-padding mask in the im2col layout (row t, lane k*mid + m)
    msk_np = np.zeros((out_len_p, KMid), np.float32)
    for k in range(K):
        pos = np.arange(out_len) * S + k - lc
        msk_np[:out_len, k * mid:(k + 1) * mid] = (
            ((pos >= 0) & (pos < L)).astype(np.float32)[:, None])

    # ---- pack EVERY constant into ONE lane-padded f32 slab ----------------------
    n_w1 = _rup(KCin, 8); n_w2 = _rup(KMid, 8); n_w3 = _rup(mid, 8)
    n_s1 = _rup(Cout, 8); n_s2 = _rup(C2, 8);   n_mk = _rup(out_len_p, 8)
    r_w1 = 0
    r_w2 = r_w1 + n_w1
    r_w3 = r_w2 + n_w2
    r_s1 = r_w3 + n_w3
    r_s2 = r_s1 + n_s1
    r_mk = r_s2 + n_s2
    r_v = r_mk + n_mk
    R = r_v + 8

    slab = jnp.zeros((R, LANE), jnp.float32)

    def _put(sl, r0, mat):
        mat = jnp.asarray(mat, jnp.float32)
        if mat.ndim == 1:
            mat = mat[None, :]
        return sl.at[r0:r0 + mat.shape[0], :mat.shape[1]].set(mat)

    slab = _put(slab, r_w1, w1k)
    slab = _put(slab, r_w2, w2f)
    slab = _put(slab, r_w3, P["w3"])
    slab = _put(slab, r_s1, P["sw1"])
    slab = _put(slab, r_s2, P["sw2"])
    slab = _put(slab, r_mk, msk_np)
    slab = _put(slab, r_v + 0, jnp.tile(P["bn1_scale"], K))
    slab = _put(slab, r_v + 1, jnp.tile(P["bn1_shift"], K))
    slab = _put(slab, r_v + 2, jnp.tile(b1f, K))
    slab = _put(slab, r_v + 3, b2f)
    slab = _put(slab, r_v + 4, P["b3"])
    slab = _put(slab, r_v + 5, P["sb1"])
    slab = _put(slab, r_v + 6, P["sb2"])

    # channel padding for the residual
    lch = (Cout - Cin) // 2 if Cout != Cin else 0
    rch = (Cout - Cin) - lch if Cout != Cin else 0

    # ---- grid: split 2-way only on dual-TensorCore chips (v7x) ------------------
    def _num_tensorcores():
        try:
            kind = jax.devices()[0].device_kind.lower()
            if "v7" in kind or "tpu7" in kind:
                return 2
        except Exception:
            pass
        return 1

    NB = 2 if (_num_tensorcores() == 2 and B >= 2 and B % 2 == 0) else 1
    bchunk = B // NB
    M = bchunk * out_len_p

    bf16, f32 = jnp.bfloat16, jnp.float32

    def _sigmoid(v):
        # exp -> EUP; approximate reciprocal -> EUP (no VALU divide sequence)
        return pl.reciprocal(1.0 + jnp.exp(-v), approx=True)

    def _swish(v):
        return v * _sigmoid(v)

    # ------------------------------------------------------------------ kernel
    def kernel(xin_ref, slab_ref, o_ref):
        # constants: static slices of the packed slab; weights cast to bf16 for MXU
        w1 = slab_ref[r_w1:r_w1 + KCin, :KMid].astype(bf16)
        w2 = slab_ref[r_w2:r_w2 + KMid, :mid].astype(bf16)
        w3 = slab_ref[r_w3:r_w3 + mid, :Cout].astype(bf16)
        sw1 = slab_ref[r_s1:r_s1 + Cout, :C2].astype(bf16)
        sw2 = slab_ref[r_s2:r_s2 + C2, :Cout].astype(bf16)
        msk = slab_ref[r_mk:r_mk + out_len_p, :KMid]
        bn1s = slab_ref[r_v + 0:r_v + 1, :KCin]
        bn1b = slab_ref[r_v + 1:r_v + 2, :KCin]
        b1v = slab_ref[r_v + 2:r_v + 3, :KMid]
        b2v = slab_ref[r_v + 3:r_v + 4, :mid]
        b3v = slab_ref[r_v + 4:r_v + 5, :Cout]
        sb1v = slab_ref[r_v + 5:r_v + 6, :C2]
        sb2v = slab_ref[r_v + 6:r_v + 7, :Cout]

        X3 = xin_ref[...]                             # (bchunk, out_len_p, GCin) f32
        Xf = X3.reshape(M, GCin)                      # free view (out_len_p % 8 == 0)
        xc = Xf[:, :KCin] if GCin != KCin else Xf     # conv-tap lanes

        out = xc
        if not is_first_block:
            if use_bn:
                out = out * bn1s + bn1b
            out = _swish(out)
            # Dropout do1: identity in eval mode.

        # conv1 (1x1, block-diag over taps) + folded BN2 -- one batch-folded matmul
        h = jnp.dot(out.astype(bf16), w1, preferred_element_type=f32) + b1v
        h = _swish(h)
        # zero conv2 "same"-padding positions (per (row, tap), broadcast over batch)
        h = (h.reshape(bchunk, out_len_p, KMid) * msk[None, :, :]).reshape(M, KMid)
        # Dropout do2: identity in eval mode.

        # conv2: single im2col matmul + folded BN3
        s = jnp.dot(h.astype(bf16), w2, preferred_element_type=f32) + b2v
        s = _swish(s)
        # Dropout do3: identity in eval mode.

        # conv3 (1x1)
        o = jnp.dot(s.astype(bf16), w3, preferred_element_type=f32) + b3v
        o3 = o.reshape(bchunk, out_len_p, Cout)

        # squeeze-excite (batched across the chunk)
        if needs_row_mask:
            rows = lax.broadcasted_iota(jnp.int32, (out_len_p, Cout), 0)
            om = jnp.where(rows[None, :, :] < out_len, o3, 0.0)
        else:
            om = o3
        se = jnp.sum(om, axis=1) * (1.0 / out_len)            # (bchunk, Cout)
        se = _swish(jnp.dot(se.astype(bf16), sw1, preferred_element_type=f32) + sb1v)
        se = _sigmoid(jnp.dot(se.astype(bf16), sw2, preferred_element_type=f32) + sb2v)
        o3 = o3 * se[:, None, :]

        # residual: max-pool = VPU max over the S tap lane-groups, then channel-pad
        ident = X3[:, :, id_off * Cin:(id_off + 1) * Cin]
        if downsample:
            for j in range(1, S):
                g = X3[:, :, (id_off + j) * Cin:(id_off + j + 1) * Cin]
                ident = jnp.maximum(ident, g)
        if Cout != Cin:
            parts = []
            if lch:
                parts.append(jnp.zeros((bchunk, out_len_p, lch), f32))
            parts.append(ident)
            if rch:
                parts.append(jnp.zeros((bchunk, out_len_p, rch), f32))
            ident = jnp.concatenate(parts, axis=-1)

        y = o3 + ident
        if Cout_pad != Cout:                                   # lane-dense store
            y = jnp.concatenate(
                [y, jnp.zeros((bchunk, out_len_p, Cout_pad - Cout), f32)], axis=-1)
        o_ref[...] = y

    # ------------------------------------------------------------- pallas_call
    flops = (2 * B * out_len_p * (KCin * KMid + KMid * mid + mid * Cout)
             + 2 * B * (Cout * C2 + C2 * Cout))
    transcendentals = B * out_len_p * (KCin + KMid + mid) + B * (C2 + Cout)
    bytes_accessed = int(xin.size * 4 + slab.size * 4 + B * out_len_p * Cout_pad * 4)

    out_full = pl.pallas_call(
        kernel,
        out_shape=jax.ShapeDtypeStruct((B, out_len_p, Cout_pad), jnp.float32),
        grid=(NB,),
        in_specs=[
            pl.BlockSpec((bchunk, out_len_p, GCin), lambda i: (i, 0, 0)),
            pl.BlockSpec((R, LANE), lambda i: (0, 0)),
        ],
        out_specs=pl.BlockSpec((bchunk, out_len_p, Cout_pad), lambda i: (i, 0, 0)),
        compiler_params=pltpu.CompilerParams(dimension_semantics=("parallel",)),
        cost_estimate=pl.CostEstimate(flops=flops,
                                      transcendentals=transcendentals,
                                      bytes_accessed=bytes_accessed),
    )(xin, slab)

    out = out_full[:, :out_len, :Cout]
    return jnp.transpose(out, (0, 2, 1))                      # (B, Cout, out_len)


# ----------------------------------------------------------------------------
# Pure-JAX reference (independent path, used only to sanity-check the kernel)
# ----------------------------------------------------------------------------
def reference_forward(x_ncl, P, cfg):
    hi = lax.Precision.HIGHEST
    B, Cin, L = x_ncl.shape
    Cout, mid = cfg["out_channels"], cfg["mid_ch"]
    K = cfg["kernel_size"]
    S = cfg["stride"] if cfg["downsample"] else 1

    x = jnp.transpose(x_ncl, (0, 2, 1)).astype(jnp.float32)   # (B, L, Cin)
    out = x
    if not cfg["is_first_block"]:
        if cfg["use_bn"]:
            out = out * P["bn1_scale"] + P["bn1_shift"]
        out = _swish_exact(out)

    h = jnp.einsum("blc,cm->blm", out, P["w1"], precision=hi) + P["b1"]
    if cfg["use_bn"]:
        h = h * P["bn2_scale"] + P["bn2_shift"]
    h = _swish_exact(h)

    out_len = -(-L // S)
    p = max(0, (out_len - 1) * S + K - L)
    hp = jnp.pad(h, ((0, 0), (p // 2, p - p // 2), (0, 0)))
    s = lax.conv_general_dilated(
        hp, P["w2"], window_strides=(S,), padding="VALID",
        dimension_numbers=("NWC", "WIO", "NWC"), precision=hi) + P["b2"]
    if cfg["use_bn"]:
        s = s * P["bn3_scale"] + P["bn3_shift"]
    s = _swish_exact(s)

    o = jnp.einsum("blm,mo->blo", s, P["w3"], precision=hi) + P["b3"]

    se = o.mean(axis=1)                                        # (B, Cout)
    se = jnp.dot(se, P["sw1"], precision=hi) + P["sb1"]
    se = _swish_exact(se)
    se = jnp.dot(se, P["sw2"], precision=hi) + P["sb2"]
    se = _sigmoid_exact(se)
    o = o * se[:, None, :]

    ident = x
    if cfg["downsample"]:
        pp = max(0, S - 1)
        identp = jnp.pad(ident, ((0, 0), (pp // 2, pp - pp // 2), (0, 0)))
        n = identp.shape[1] // S
        ident = identp[:, :n * S, :].reshape(B, n, S, Cin).max(axis=2)
    if Cout != Cin:
        d = Cout - Cin
        ident = jnp.pad(ident, ((0, 0), (0, 0), (d // 2, d - d // 2)))

    return jnp.transpose(o + ident, (0, 2, 1))


# ----------------------------------------------------------------------------
# Deterministic parameter init (torch shapes -> (in, out) / (tap, in, out) layout)
# ----------------------------------------------------------------------------
def init_params(key, cfg):
    Cin, Cout, mid, K = (cfg["in_channels"], cfg["out_channels"],
                         cfg["mid_ch"], cfg["kernel_size"])
    ks = list(jax.random.split(key, 24))
    nxt = iter(ks)

    def rnd(shape, scale):
        return scale * jax.random.normal(next(nxt), shape, jnp.float32)

    # torch-shaped weights
    conv1_w = rnd((mid, Cin, 1), 0.2);   conv1_b = rnd((mid,), 0.1)
    conv2_w = rnd((mid, mid, K), 0.2);   conv2_b = rnd((mid,), 0.1)
    conv3_w = rnd((Cout, mid, 1), 0.2);  conv3_b = rnd((Cout,), 0.1)
    fc1_w = rnd((Cout // 2, Cout), 0.2); fc1_b = rnd((Cout // 2,), 0.1)
    fc2_w = rnd((Cout, Cout // 2), 0.2); fc2_b = rnd((Cout,), 0.1)

    eps = 1e-5

    def bn_fold(C):
        gamma = 1.0 + rnd((C,), 0.1)
        beta = rnd((C,), 0.1)
        mean = rnd((C,), 0.1)
        var = 1.0 + jnp.abs(rnd((C,), 0.1))
        scale = gamma / jnp.sqrt(var + eps)
        shift = beta - mean * scale
        return scale, shift

    bn1s, bn1b = bn_fold(Cin)
    bn2s, bn2b = bn_fold(mid)
    bn3s, bn3b = bn_fold(mid)

    return dict(
        bn1_scale=bn1s, bn1_shift=bn1b,
        w1=jnp.transpose(conv1_w[:, :, 0], (1, 0)), b1=conv1_b,
        bn2_scale=bn2s, bn2_shift=bn2b,
        w2=jnp.transpose(conv2_w, (2, 1, 0)),       b2=conv2_b,   # (K, in, out)
        bn3_scale=bn3s, bn3_shift=bn3b,
        w3=jnp.transpose(conv3_w[:, :, 0], (1, 0)), b3=conv3_b,
        sw1=fc1_w.T, sb1=fc1_b,
        sw2=fc2_w.T, sb2=fc2_b,
    )


# ----------------------------------------------------------------------------
if __name__ == "__main__":
    cfg = dict(
        in_channels=16, out_channels=32, ratio=0.5, kernel_size=3, stride=2,
        groups=1, downsample=True, is_first_block=False, use_bn=True,
        use_do=True,                       # dropout -> identity in eval mode
    )
    cfg["mid_ch"] = int(cfg["out_channels"] * cfg["ratio"])

    B, L = 2, 64
    key = jax.random.PRNGKey(0)
    k_x, k_p = jax.random.split(key)
    x = jax.random.normal(k_x, (B, cfg["in_channels"], L), jnp.float32)  # NCL, like torch
    params = init_params(k_p, cfg)

    out = basic_block_pallas(x, params, cfg)
    out = jax.block_until_ready(out)

    ref = jax.block_until_ready(reference_forward(x, params, cfg))
    # bf16 MXU operands (f32 accumulation) + EUP approx reciprocal -> 3e-2 tolerance
    np.testing.assert_allclose(np.asarray(out), np.asarray(ref), rtol=3e-2, atol=3e-2)

    print("KERNEL_OK")
</pallas_src>

<mosaic_0001>
module attributes {stable_mosaic.version = 11 : i64} {
  func.func @kernel(%arg0: i32, %arg1: memref<2x32x48xf32, #tpu.memory_space<vmem>>, %arg2: memref<200x128xf32, #tpu.memory_space<vmem>>, %arg3: memref<2x32x128xf32, #tpu.memory_space<vmem>>) attributes {dimension_semantics = [#tpu.dimension_semantics<parallel>], iteration_bounds = array<i64: 1>, scalar_prefetch = 0 : i64, scratch_operands = 0 : i64, tpu.core_type = #tpu.core_type<tc>, window_params = [{transform_indices = @transform_0, window_bounds = array<i64: 2, 32, 48>}, {pipeline_mode = #tpu.pipeline_mode<synchronous>, transform_indices = @transform_1, window_bounds = array<i64: 200, 128>}, {transform_indices = @transform_2, window_bounds = array<i64: 2, 32, 128>}]} {
    %c0 = arith.constant 0 : index
    %c0_0 = arith.constant 0 : index
    %0 = vector.load %arg2[%c0, %c0_0] : memref<200x128xf32, #tpu.memory_space<vmem>>, vector<48x48xf32>
    %1 = arith.truncf %0 : vector<48x48xf32> to vector<48x48xbf16>
    %c48 = arith.constant 48 : index
    %c0_1 = arith.constant 0 : index
    %2 = vector.load %arg2[%c48, %c0_1] : memref<200x128xf32, #tpu.memory_space<vmem>>, vector<48x16xf32>
    %3 = arith.truncf %2 : vector<48x16xf32> to vector<48x16xbf16>
    %c96 = arith.constant 96 : index
    %c0_2 = arith.constant 0 : index
    %4 = vector.load %arg2[%c96, %c0_2] : memref<200x128xf32, #tpu.memory_space<vmem>>, vector<16x32xf32>
    %5 = arith.truncf %4 : vector<16x32xf32> to vector<16x32xbf16>
    %c112 = arith.constant 112 : index
    %c0_3 = arith.constant 0 : index
    %6 = vector.load %arg2[%c112, %c0_3] : memref<200x128xf32, #tpu.memory_space<vmem>>, vector<32x16xf32>
    %7 = arith.truncf %6 : vector<32x16xf32> to vector<32x16xbf16>
    %c144 = arith.constant 144 : index
    %c0_4 = arith.constant 0 : index
    %8 = vector.load %arg2[%c144, %c0_4] : memref<200x128xf32, #tpu.memory_space<vmem>>, vector<16x32xf32>
    %9 = arith.truncf %8 : vector<16x32xf32> to vector<16x32xbf16>
    %c160 = arith.constant 160 : index
    %c0_5 = arith.constant 0 : index
    %10 = vector.load %arg2[%c160, %c0_5] : memref<200x128xf32, #tpu.memory_space<vmem>>, vector<32x48xf32>
    %c192 = arith.constant 192 : index
    %c0_6 = arith.constant 0 : index
    %11 = vector.load %arg2[%c192, %c0_6] : memref<200x128xf32, #tpu.memory_space<vmem>>, vector<1x48xf32>
    %c193 = arith.constant 193 : index
    %c0_7 = arith.constant 0 : index
    %12 = vector.load %arg2[%c193, %c0_7] : memref<200x128xf32, #tpu.memory_space<vmem>>, vector<1x48xf32>
    %c194 = arith.constant 194 : index
    %c0_8 = arith.constant 0 : index
    %13 = vector.load %arg2[%c194, %c0_8] : memref<200x128xf32, #tpu.memory_space<vmem>>, vector<1x48xf32>
    %c195 = arith.constant 195 : index
    %c0_9 = arith.constant 0 : index
    %14 = vector.load %arg2[%c195, %c0_9] : memref<200x128xf32, #tpu.memory_space<vmem>>, vector<1x16xf32>
    %c196 = arith.constant 196 : index
    %c0_10 = arith.constant 0 : index
    %15 = vector.load %arg2[%c196, %c0_10] : memref<200x128xf32, #tpu.memory_space<vmem>>, vector<1x32xf32>
    %c197 = arith.constant 197 : index
    %c0_11 = arith.constant 0 : index
    %16 = vector.load %arg2[%c197, %c0_11] : memref<200x128xf32, #tpu.memory_space<vmem>>, vector<1x16xf32>
    %c198 = arith.constant 198 : index
    %c0_12 = arith.constant 0 : index
    %17 = vector.load %arg2[%c198, %c0_12] : memref<200x128xf32, #tpu.memory_space<vmem>>, vector<1x32xf32>
    %c0_13 = arith.constant 0 : index
    %c0_14 = arith.constant 0 : index
    %c0_15 = arith.constant 0 : index
    %18 = vector.load %arg1[%c0_13, %c0_14, %c0_15] : memref<2x32x48xf32, #tpu.memory_space<vmem>>, vector<2x32x48xf32>
    %19 = vector.shape_cast %18 : vector<2x32x48xf32> to vector<64x48xf32>
    %20 = vector.broadcast %11 : vector<1x48xf32> to vector<64x48xf32>
    %21 = arith.mulf %19, %20 : vector<64x48xf32>
    %22 = vector.broadcast %12 : vector<1x48xf32> to vector<64x48xf32>
    %23 = arith.addf %21, %22 : vector<64x48xf32>
    %cst = arith.constant 0.000000e+00 : f32
    %24 = vector.broadcast %cst : f32 to vector<64x48xf32>
    %25 = arith.subf %24, %23 : vector<64x48xf32>
    %26 = math.exp %25 : vector<64x48xf32>
    %cst_16 = arith.constant 1.000000e+00 : f32
    %27 = vector.broadcast %cst_16 : f32 to vector<64x48xf32>
    %28 = arith.addf %27, %26 : vector<64x48xf32>
    %29 = tpu.reciprocal %28 {approx = true} : vector<64x48xf32> -> vector<64x48xf32>
    %30 = arith.mulf %23, %29 : vector<64x48xf32>
    %31 = arith.truncf %30 : vector<64x48xf32> to vector<64x48xbf16>
    %cst_17 = arith.constant dense<0.000000e+00> : vector<64x48xf32>
    %32 = tpu.matmul %31, %1, %cst_17 {dimension_numbers = #tpu.dot_dimension_numbers<[1], [0], [0], [1], [0, 0, 1, 1], [], []>} : vector<64x48xbf16>, vector<48x48xbf16>, vector<64x48xf32> -> vector<64x48xf32>
    %33 = vector.broadcast %13 : vector<1x48xf32> to vector<64x48xf32>
    %34 = arith.addf %32, %33 : vector<64x48xf32>
    %cst_18 = arith.constant 0.000000e+00 : f32
    %35 = vector.broadcast %cst_18 : f32 to vector<64x48xf32>
    %36 = arith.subf %35, %34 : vector<64x48xf32>
    %37 = math.exp %36 : vector<64x48xf32>
    %cst_19 = arith.constant 1.000000e+00 : f32
    %38 = vector.broadcast %cst_19 : f32 to vector<64x48xf32>
    %39 = arith.addf %38, %37 : vector<64x48xf32>
    %40 = tpu.reciprocal %39 {approx = true} : vector<64x48xf32> -> vector<64x48xf32>
    %41 = arith.mulf %34, %40 : vector<64x48xf32>
    %42 = vector.shape_cast %41 : vector<64x48xf32> to vector<2x32x48xf32>
    %43 = vector.shape_cast %10 : vector<32x48xf32> to vector<1x32x48xf32>
    %44 = vector.broadcast %43 : vector<1x32x48xf32> to vector<2x32x48xf32>
    %45 = arith.mulf %42, %44 : vector<2x32x48xf32>
    %46 = vector.shape_cast %45 : vector<2x32x48xf32> to vector<64x48xf32>
    %47 = arith.truncf %46 : vector<64x48xf32> to vector<64x48xbf16>
    %cst_20 = arith.constant dense<0.000000e+00> : vector<64x16xf32>
    %48 = tpu.matmul %47, %3, %cst_20 {dimension_numbers = #tpu.dot_dimension_numbers<[1], [0], [0], [1], [0, 0, 1, 1], [], []>} : vector<64x48xbf16>, vector<48x16xbf16>, vector<64x16xf32> -> vector<64x16xf32>
    %49 = vector.broadcast %14 : vector<1x16xf32> to vector<64x16xf32>
    %50 = arith.addf %48, %49 : vector<64x16xf32>
    %cst_21 = arith.constant 0.000000e+00 : f32
    %51 = vector.broadcast %cst_21 : f32 to vector<64x16xf32>
    %52 = arith.subf %51, %50 : vector<64x16xf32>
    %53 = math.exp %52 : vector<64x16xf32>
    %cst_22 = arith.constant 1.000000e+00 : f32
    %54 = vector.broadcast %cst_22 : f32 to vector<64x16xf32>
    %55 = arith.addf %54, %53 : vector<64x16xf32>
    %56 = tpu.reciprocal %55 {approx = true} : vector<64x16xf32> -> vector<64x16xf32>
    %57 = arith.mulf %50, %56 : vector<64x16xf32>
    %58 = arith.truncf %57 : vector<64x16xf32> to vector<64x16xbf16>
    %cst_23 = arith.constant dense<0.000000e+00> : vector<64x32xf32>
    %59 = tpu.matmul %58, %5, %cst_23 {dimension_numbers = #tpu.dot_dimension_numbers<[1], [0], [0], [1], [0, 0, 1, 1], [], []>} : vector<64x16xbf16>, vector<16x32xbf16>, vector<64x32xf32> -> vector<64x32xf32>
    %60 = vector.broadcast %15 : vector<1x32xf32> to vector<64x32xf32>
    %61 = arith.addf %59, %60 : vector<64x32xf32>
    %62 = vector.shape_cast %61 : vector<64x32xf32> to vector<2x32x32xf32>
    %cst_24 = arith.constant dense<0.000000e+00> : vector<2x32xf32>
    %63 = vector.multi_reduction <add>, %62, %cst_24 [1] : vector<2x32x32xf32> to vector<2x32xf32>
    %cst_25 = arith.constant 3.125000e-02 : f32
    %64 = vector.broadcast %cst_25 : f32 to vector<2x32xf32>
    %65 = arith.mulf %63, %64 : vector<2x32xf32>
    %66 = arith.truncf %65 : vector<2x32xf32> to vector<2x32xbf16>
    %cst_26 = arith.constant dense<0.000000e+00> : vector<2x16xf32>
    %67 = tpu.matmul %66, %7, %cst_26 {dimension_numbers = #tpu.dot_dimension_numbers<[1], [0], [0], [1], [0, 0, 1, 1], [], []>} : vector<2x32xbf16>, vector<32x16xbf16>, vector<2x16xf32> -> vector<2x16xf32>
    %68 = vector.broadcast %16 : vector<1x16xf32> to vector<2x16xf32>
    %69 = arith.addf %67, %68 : vector<2x16xf32>
    %cst_27 = arith.constant 0.000000e+00 : f32
    %70 = vector.broadcast %cst_27 : f32 to vector<2x16xf32>
    %71 = arith.subf %70, %69 : vector<2x16xf32>
    %72 = math.exp %71 : vector<2x16xf32>
    %cst_28 = arith.constant 1.000000e+00 : f32
    %73 = vector.broadcast %cst_28 : f32 to vector<2x16xf32>
    %74 = arith.addf %73, %72 : vector<2x16xf32>
    %75 = tpu.reciprocal %74 {approx = true} : vector<2x16xf32> -> vector<2x16xf32>
    %76 = arith.mulf %69, %75 : vector<2x16xf32>
    %77 = arith.truncf %76 : vector<2x16xf32> to vector<2x16xbf16>
    %cst_29 = arith.constant dense<0.000000e+00> : vector<2x32xf32>
    %78 = tpu.matmul %77, %9, %cst_29 {dimension_numbers = #tpu.dot_dimension_numbers<[1], [0], [0], [1], [0, 0, 1, 1], [], []>} : vector<2x16xbf16>, vector<16x32xbf16>, vector<2x32xf32> -> vector<2x32xf32>
    %79 = vector.broadcast %17 : vector<1x32xf32> to vector<2x32xf32>
    %80 = arith.addf %78, %79 : vector<2x32xf32>
    %cst_30 = arith.constant 0.000000e+00 : f32
    %81 = vector.broadcast %cst_30 : f32 to vector<2x32xf32>
    %82 = arith.subf %81, %80 : vector<2x32xf32>
    %83 = math.exp %82 : vector<2x32xf32>
    %cst_31 = arith.constant 1.000000e+00 : f32
    %84 = vector.broadcast %cst_31 : f32 to vector<2x32xf32>
    %85 = arith.addf %84, %83 : vector<2x32xf32>
    %86 = tpu.reciprocal %85 {approx = true} : vector<2x32xf32> -> vector<2x32xf32>
    %87 = vector.shape_cast %86 : vector<2x32xf32> to vector<2x1x32xf32>
    %88 = vector.broadcast %87 : vector<2x1x32xf32> to vector<2x32x32xf32>
    %89 = arith.mulf %62, %88 : vector<2x32x32xf32>
    %90 = vector.extract_strided_slice %18 {offsets = [0, 0, 0], sizes = [2, 32, 16], strides = [1, 1, 1]} : vector<2x32x48xf32> to vector<2x32x16xf32>
    %91 = vector.extract_strided_slice %18 {offsets = [0, 0, 16], sizes = [2, 32, 16], strides = [1, 1, 1]} : vector<2x32x48xf32> to vector<2x32x16xf32>
    %92 = arith.maximumf %90, %91 : vector<2x32x16xf32>
    %cst_32 = arith.constant 0.000000e+00 : f32
    %93 = vector.broadcast %cst_32 : f32 to vector<2x32x8xf32>
    %cst_33 = arith.constant 0.000000e+00 : f32
    %94 = vector.broadcast %cst_33 : f32 to vector<2x32x8xf32>
    %95 = tpu.concatenate %93, %92, %94 in 2 : vector<2x32x8xf32>, vector<2x32x16xf32>, vector<2x32x8xf32> -> vector<2x32x32xf32>
    %96 = arith.addf %89, %95 : vector<2x32x32xf32>
    %cst_34 = arith.constant 0.000000e+00 : f32
    %97 = vector.broadcast %cst_34 : f32 to vector<2x32x96xf32>
    %98 = tpu.concatenate %96, %97 in 2 : vector<2x32x32xf32>, vector<2x32x96xf32> -> vector<2x32x128xf32>
    %c0_35 = arith.constant 0 : index
    %c0_36 = arith.constant 0 : index
    %c0_37 = arith.constant 0 : index
    %99 = vector.load %arg3[%c0_35, %c0_36, %c0_37] : memref<2x32x128xf32, #tpu.memory_space<vmem>>, vector<2x32x128xf32>
    tpu.vector_store %arg3[%c0_35, %c0_36, %c0_37], %98 {strides = array<i32>} : memref<2x32x128xf32, #tpu.memory_space<vmem>>, vector<2x32x128xf32>,
    return
  }
  func.func @transform_0(%arg0: i32) -> (i32, i32, i32) {
    %c0_i32 = arith.constant 0 : i32
    %c0_i32_0 = arith.constant 0 : i32
    %c0_i32_1 = arith.constant 0 : i32
    return %arg0, %c0_i32, %c0_i32_0 : i32, i32, i32
  }
  func.func @transform_1(%arg0: i32) -> (i32, i32) {
    %c0_i32 = arith.constant 0 : i32
    %c0_i32_0 = arith.constant 0 : i32
    %c0_i32_1 = arith.constant 0 : i32
    return %c0_i32, %c0_i32_0 : i32, i32
  }
  func.func @transform_2(%arg0: i32) -> (i32, i32, i32) {
    %c0_i32 = arith.constant 0 : i32
    %c0_i32_0 = arith.constant 0 : i32
    %c0_i32_1 = arith.constant 0 : i32
    return %arg0, %c0_i32, %c0_i32_0 : i32, i32, i32
  }
}

</mosaic_0001>

<llo_original>
// kernel: tpu_custom_call.1
$region0: #{tpu_custom_call.1}
  #allocation0 [shape = 'u32[]', space=smem, size = 0x4, offset = 0x4, fixed_abs, tag = 'smem constant byte address 0x4 - core index']
  #allocation1 [shape = 'u32[144,128]{1,0:T(1,128)}', space=vmem, size = 0x12000, scoped, tag = 'internal scratch']
  %s0 = inlined_call_operand.hbm [shape: f32[2,32,48], index: 0, kind: input, shape index: {}]
  %s1 = inlined_call_operand.hbm [shape: f32[200,128], index: 1, kind: input, shape index: {}]
  %s2 = inlined_call_operand.hbm [shape: f32[2,32,128], index: 2, kind: output, shape index: {}]
  %s3 = sld [smem:[#allocation0]]
  $region26: #{tpu_custom_call.1} parent=0
    _
  %s5 = ssub.s32 1, %s3
  %s6 = scalar_select 0, %s5, %s3
  $region1: #{tpu_custom_call.1} parent=0
    #allocation2 [shape = 'u8[32768]{0}', space=vmem, size = 0x8000, scoped, tag = 'input window, operand 0, single buffered']
    #allocation3 [shape = 's32[1]{0}', space=sflag, size = 0x4, scoped, tag = 'scoped memory for tpu_custom_call.1']
    #allocation4 [shape = 's32[1]{0}', space=sflag, size = 0x4, scoped, tag = 'scoped memory for tpu_custom_call.1']
    #allocation5 [shape = 'u8[102400]{0}', space=vmem, size = 0x19000, scoped, tag = 'input window, operand 1, single buffered']
    #allocation6 [shape = 's32[1]{0}', space=sflag, size = 0x4, scoped, tag = 'scoped memory for tpu_custom_call.1']
    #allocation7 [shape = 'u8[32768]{0}', space=vmem, size = 0x8000, scoped, tag = 'output window, operand 0, single buffered']
    %7 = vsyncpa [#allocation3], 0
    %8 = vsyncpa [#allocation6], 0
    %9 = vsyncpa [#allocation4], 0
    // Predicated region
    $region2: #{tpu_custom_call.1} parent=1 // pred_check
      _
    $region3: #{tpu_custom_call.1} parent=1 // pred_check_branch
      %11 = sbr.rel (0) target = $region5
    $region4: #{tpu_custom_call.1} parent=1 // pred_region
      %s13 = ssub.s32 1024, 1024
      %14 = vsyncadd [#allocation3], %s13
      %s15 = sshll.u32 [#allocation2], 4
      %s16 = int_to_ptr.vmem [resolvable:$true] %s15
      %21 = dma.hbm_to_vmem [thread:$0]  %s0, 1024, %s16, [#allocation3], 128, 128, 8
    $region5: #{tpu_custom_call.1} parent=1 // pred_fallthru
      _
    // Predicated region
    $region6: #{tpu_custom_call.1} parent=1 // pred_check
      _
    $region7: #{tpu_custom_call.1} parent=1 // pred_check_branch
      %23 = sbr.rel (0) target = $region9
    $region8: #{tpu_custom_call.1} parent=1 // pred_region
      %s25 = ssub.s32 3200, 3200
      %26 = vsyncadd [#allocation6], %s25
      %s27 = sshll.u32 [#allocation5], 4
      %s28 = int_to_ptr.vmem [resolvable:$true] %s27
      %33 = dma.hbm_to_vmem [thread:$0]  %s1, 3200, %s28, [#allocation6], 128, 128, 8
    $region9: #{tpu_custom_call.1} parent=1 // pred_fallthru
      _
    // Predicated region
    $region10: #{tpu_custom_call.1} parent=1 // pred_check
      _
    $region11: #{tpu_custom_call.1} parent=1 // pred_check_branch
      %35 = sbr.rel (0) target = $region13
    $region12: #{tpu_custom_call.1} parent=1 // pred_region
      %36 = dma.done [#allocation3], 1024
    $region13: #{tpu_custom_call.1} parent=1 // pred_fallthru
      _
    // Predicated region
    $region14: #{tpu_custom_call.1} parent=1 // pred_check
      _
    $region15: #{tpu_custom_call.1} parent=1 // pred_check_branch
      %38 = sbr.rel (0) target = $region17
    $region16: #{tpu_custom_call.1} parent=1 // pred_region
      %39 = dma.done [#allocation6], 3200
    $region17: #{tpu_custom_call.1} parent=1 // pred_fallthru
      _
    %v41 = vld [vmem:[#allocation5] sm:$0xff]
    %v42 = vld [vmem:[#allocation5 + $0x8] sm:$0xff]
    %v43 = vld [vmem:[#allocation5 + $0x10] sm:$0xff]
    %v44 = vld [vmem:[#allocation5 + $0x18] sm:$0xff]
    %v45 = vld [vmem:[#allocation5 + $0x20] sm:$0xff]
    %v46 = vld [vmem:[#allocation5 + $0x28] sm:$0xff]
    %v47 = vpack.c.bf16 %v42, %v41
    %v48 = vpack.c.bf16 %v44, %v43
    %v49 = vpack.c.bf16 %v46, %v45
    %v50 = vld [vmem:[#allocation5 + $0x30] sm:$0xff]
    %v51 = vld [vmem:[#allocation5 + $0x38] sm:$0xff]
    %v52 = vld [vmem:[#allocation5 + $0x40] sm:$0xff]
    %v53 = vld [vmem:[#allocation5 + $0x48] sm:$0xff]
    %v54 = vld [vmem:[#allocation5 + $0x50] sm:$0xff]
    %v55 = vld [vmem:[#allocation5 + $0x58] sm:$0xff]
    %v56 = vpack.c.bf16 %v51, %v50
    %v57 = vpack.c.bf16 %v53, %v52
    %v58 = vpack.c.bf16 %v55, %v54
    %v59 = vld [vmem:[#allocation5 + $0x60] sm:$0xff]
    %v60 = vld [vmem:[#allocation5 + $0x68] sm:$0xff]
    %v61 = vpack.c.bf16 %v60, %v59
    %v62 = vld [vmem:[#allocation5 + $0x70] sm:$0xff]
    %v63 = vld [vmem:[#allocation5 + $0x78] sm:$0xff]
    %v64 = vld [vmem:[#allocation5 + $0x80] sm:$0xff]
    %v65 = vld [vmem:[#allocation5 + $0x88] sm:$0xff]
    %v66 = vpack.c.bf16 %v63, %v62
    %v67 = vpack.c.bf16 %v65, %v64
    %v68 = vld [vmem:[#allocation5 + $0x90] sm:$0xff]
    %v69 = vld [vmem:[#allocation5 + $0x98] sm:$0xff]
    %v70 = vpack.c.bf16 %v69, %v68
    %v71 = vld [vmem:[#allocation5 + $0xa0] sm:$0xff]
    %v72 = vld [vmem:[#allocation5 + $0xa8] sm:$0xff]
    %v73 = vld [vmem:[#allocation5 + $0xb0] sm:$0xff]
    %v74 = vld [vmem:[#allocation5 + $0xb8] sm:$0xff]
    %v75 = vld [vmem:[#allocation5 + $0xc0] sm:$0x1]
    %v76 = vld [vmem:[#allocation5 + $0xc1] sm:$0x1]
    %v77 = vld [vmem:[#allocation5 + $0xc2] sm:$0x1]
    %v78 = vld [vmem:[#allocation5 + $0xc3] sm:$0x1]
    %v79 = vld [vmem:[#allocation5 + $0xc4] sm:$0x1]
    %v80 = vld [vmem:[#allocation5 + $0xc5] sm:$0x1]
    %v81 = vld [vmem:[#allocation5 + $0xc6] sm:$0x1]
    %v82 = vld [vmem:[#allocation2] sm:$0xff]
    %v83 = vld [vmem:[#allocation2 + $0x8] sm:$0xff]
    %v84 = vld [vmem:[#allocation2 + $0x10] sm:$0xff]
    %v85 = vld [vmem:[#allocation2 + $0x18] sm:$0xff]
    %v86 = vld [vmem:[#allocation2 + $0x20] sm:$0xff]
    %v87 = vld [vmem:[#allocation2 + $0x28] sm:$0xff]
    %v88 = vld [vmem:[#allocation2 + $0x30] sm:$0xff]
    %v89 = vld [vmem:[#allocation2 + $0x38] sm:$0xff]
    %v90 = vlaneseq
    %v91 = vshrl.u32 %v90, 7
    %v92 = vsub.s32 0, %v91
    %v93 = vrot.slane %v75, %v92
    %v94 = vmul.f32 %v82, %v93
    %v95 = vmul.f32 %v83, %v93
    %v96 = vmul.f32 %v84, %v93
    %v97 = vmul.f32 %v85, %v93
    %v98 = vmul.f32 %v86, %v93
    %v99 = vmul.f32 %v87, %v93
    %v100 = vmul.f32 %v88, %v93
    %v101 = vmul.f32 %v89, %v93
    %v102 = vlaneseq
    %v103 = vshrl.u32 %v102, 7
    %v104 = vsub.s32 0, %v103
    %v105 = vrot.slane %v76, %v104
    %v106 = vadd.f32 %v94, %v105
    %v107 = vadd.f32 %v95, %v105
    %v108 = vadd.f32 %v96, %v105
    %v109 = vadd.f32 %v97, %v105
    %v110 = vadd.f32 %v98, %v105
    %v111 = vadd.f32 %v99, %v105
    %v112 = vadd.f32 %v100, %v105
    %v113 = vadd.f32 %v101, %v105
    %v114 = vsub.f32 0.0, %v106
    %v115 = vsub.f32 0.0, %v107
    %v116 = vsub.f32 0.0, %v108
    %v117 = vsub.f32 0.0, %v109
    %v118 = vsub.f32 0.0, %v110
    %v119 = vsub.f32 0.0, %v111
    %v120 = vsub.f32 0.0, %v112
    %v121 = vsub.f32 0.0, %v113
    %v122 = vmul.f32 %v114, 1.442695
    %v123 = vpow.pop %v122
    %v124 = vmul.f32 %v115, 1.442695
    %v125 = vpow.pop %v124
    %v126 = vmul.f32 %v116, 1.442695
    %v127 = vpow.pop %v126
    %v128 = vmul.f32 %v117, 1.442695
    %v129 = vpow.pop %v128
    %v130 = vmul.f32 %v118, 1.442695
    %v131 = vpow.pop %v130
    %v132 = vmul.f32 %v119, 1.442695
    %v133 = vpow.pop %v132
    %v134 = vmul.f32 %v120, 1.442695
    %v135 = vpow.pop %v134
    %v136 = vmul.f32 %v121, 1.442695
    %v137 = vpow.pop %v136
    %v138 = vadd.f32 %v123, 1.0
    %v139 = vadd.f32 %v125, 1.0
    %v140 = vadd.f32 %v127, 1.0
    %v141 = vadd.f32 %v129, 1.0
    %v142 = vadd.f32 %v131, 1.0
    %v143 = vadd.f32 %v133, 1.0
    %v144 = vadd.f32 %v135, 1.0
    %v145 = vadd.f32 %v137, 1.0
    %v146 = vrcp.pop %v138
    %v147 = vrcp.pop %v139
    %v148 = vrcp.pop %v140
    %v149 = vrcp.pop %v141
    %v150 = vrcp.pop %v142
    %v151 = vrcp.pop %v143
    %v152 = vrcp.pop %v144
    %v153 = vrcp.pop %v145
    %v154 = vmul.f32 %v106, %v146
    %v155 = vmul.f32 %v107, %v147
    %v156 = vmul.f32 %v108, %v148
    %v157 = vmul.f32 %v109, %v149
    %v158 = vmul.f32 %v110, %v150
    %v159 = vmul.f32 %v111, %v151
    %v160 = vmul.f32 %v112, %v152
    %v161 = vmul.f32 %v113, %v153
    %v162 = vpack.c.bf16 %v155, %v154
    %v163 = vpack.c.bf16 %v157, %v156
    %v164 = vpack.c.bf16 %v159, %v158
    %v165 = vpack.c.bf16 %v161, %v160
    %v166 = vlaneseq
    %v167 = vshrl.u32 %v166, 7
    %v168 = vsub.s32 0, %v167
    %v169 = vrot.slane %v77, %v168
    %vm170 = vcmask 392192
    %v172 = vsel %vm170, %v162, 0
    %v175 = vsel %vm170, %v163, 0
    %v178 = vsel %vm170, %v164, 0
    %v181 = vsel %vm170, %v165, 0
    %183 = vmatprep.subr.bf16.mxu0 0
    %184 = vmatpush1.bf16.msra.mxu0 %v47
    %185 = vmatprep.subr.bf16.mxu0 0
    %186 = vmatpush1.bf16.msra.mxu0 %v48
    %187 = vmatprep.subr.bf16.mxu0 0
    %188 = vmatpush1.bf16.msra.mxu0 %v49
    %189 = vmatprep.subr.bf16.mxu0 0
    %190 = vmatpush1.bf16.msra.mxu0 0
    %191 = vmatprep.subr.bf16.mxu0 0
    %192 = vmatpush1.bf16.msra.mxu0 0
    %193 = vmatprep.subr.bf16.mxu0 0
    %194 = vmatpush1.bf16.msra.mxu0 0
    %195 = vmatprep.subr.bf16.mxu0 0
    %196 = vmatpush1.bf16.msra.mxu0 0
    %197 = vmatprep.subr.bf16.mxu0 0
    %198 = vmatpush1.bf16.msra.mxu0 0
    %199 = vmatprep.subr.bf16.mxu0 0
    %200 = vmatpush1.bf16.msra.mxu0 0
    %201 = vmatprep.subr.bf16.mxu0 0
    %202 = vmatpush1.bf16.msra.mxu0 0
    %203 = vmatprep.subr.bf16.mxu0 0
    %204 = vmatpush1.bf16.msra.mxu0 0
    %205 = vmatprep.subr.bf16.mxu0 0
    %206 = vmatpush1.bf16.msra.mxu0 0
    %207 = vmatprep.subr.bf16.mxu0 0
    %208 = vmatpush1.bf16.msra.mxu0 0
    %209 = vmatprep.subr.bf16.mxu0 0
    %210 = vmatpush1.bf16.msra.mxu0 0
    %211 = vmatprep.subr.bf16.mxu0 0
    %212 = vmatpush1.bf16.msra.mxu0 0
    %213 = vmatprep.subr.bf16.mxu0 0
    %214 = vmatpush1.bf16.msra.mxu0 0
    %215 = vmatprep.mubr.bf16.mxu0 0
    %216 = vmatmul.mubr.bf16.gmra.mrb[0].mxu0 %v172
    %v217 = vpop.f32.mrb[0].mxu0
    %v218 = vadd.f32 %v169, %v217
    %v219 = vpop.f32.mrb[0].mxu0
    %v220 = vpop.f32.mrb[0].mxu0
    %v221 = vadd.f32 %v169, %v220
    %v222 = vpop.f32.mrb[0].mxu0
    %223 = vmatprep.mubr.bf16.mxu0 0
    %224 = vmatmul.mubr.bf16.gmra.mrb[0].mxu0 %v175
    %v225 = vpop.f32.mrb[0].mxu0
    %v226 = vadd.f32 %v169, %v225
    %v227 = vpop.f32.mrb[0].mxu0
    %v228 = vpop.f32.mrb[0].mxu0
    %v229 = vadd.f32 %v169, %v228
    %v230 = vpop.f32.mrb[0].mxu0
    %231 = vmatprep.mubr.bf16.mxu0 0
    %232 = vmatmul.mubr.bf16.gmra.mrb[0].mxu0 %v178
    %v233 = vpop.f32.mrb[0].mxu0
    %v234 = vadd.f32 %v169, %v233
    %v235 = vpop.f32.mrb[0].mxu0
    %v236 = vpop.f32.mrb[0].mxu0
    %v237 = vadd.f32 %v169, %v236
    %v238 = vpop.f32.mrb[0].mxu0
    %239 = vmatprep.mubr.bf16.mxu0 0
    %240 = vmatmul.mubr.bf16.gmra.mrb[0].mxu0 %v181
    %v241 = vpop.f32.mrb[0].mxu0
    %v242 = vadd.f32 %v169, %v241
    %v243 = vpop.f32.mrb[0].mxu0
    %v244 = vpop.f32.mrb[0].mxu0
    %v245 = vadd.f32 %v169, %v244
    %v246 = vpop.f32.mrb[0].mxu0
    %247 = vdwg.mxu0
    %v248 = vsub.f32 0.0, %v218
    %v249 = vsub.f32 0.0, %v221
    %v250 = vsub.f32 0.0, %v226
    %v251 = vsub.f32 0.0, %v229
    %v252 = vsub.f32 0.0, %v234
    %v253 = vsub.f32 0.0, %v237
    %v254 = vsub.f32 0.0, %v242
    %v255 = vsub.f32 0.0, %v245
    %v256 = vmul.f32 %v248, 1.442695
    %v257 = vpow.pop %v256
    %v258 = vmul.f32 %v249, 1.442695
    %v259 = vpow.pop %v258
    %v260 = vmul.f32 %v250, 1.442695
    %v261 = vpow.pop %v260
    %v262 = vmul.f32 %v251, 1.442695
    %v263 = vpow.pop %v262
    %v264 = vmul.f32 %v252, 1.442695
    %v265 = vpow.pop %v264
    %v266 = vmul.f32 %v253, 1.442695
    %v267 = vpow.pop %v266
    %v268 = vmul.f32 %v254, 1.442695
    %v269 = vpow.pop %v268
    %v270 = vmul.f32 %v255, 1.442695
    %v271 = vpow.pop %v270
    %v272 = vadd.f32 %v257, 1.0
    %v273 = vadd.f32 %v259, 1.0
    %v274 = vadd.f32 %v261, 1.0
    %v275 = vadd.f32 %v263, 1.0
    %v276 = vadd.f32 %v265, 1.0
    %v277 = vadd.f32 %v267, 1.0
    %v278 = vadd.f32 %v269, 1.0
    %v279 = vadd.f32 %v271, 1.0
    %v280 = vrcp.pop %v272
    %v281 = vrcp.pop %v273
    %v282 = vrcp.pop %v274
    %v283 = vrcp.pop %v275
    %v284 = vrcp.pop %v276
    %v285 = vrcp.pop %v277
    %v286 = vrcp.pop %v278
    %v287 = vrcp.pop %v279
    %v288 = vmul.f32 %v218, %v280
    %v289 = vmul.f32 %v221, %v281
    %v290 = vmul.f32 %v226, %v282
    %v291 = vmul.f32 %v229, %v283
    %v292 = vmul.f32 %v234, %v284
    %v293 = vmul.f32 %v237, %v285
    %v294 = vmul.f32 %v242, %v286
    %v295 = vmul.f32 %v245, %v287
    %v296 = vmul.f32 %v288, %v71
    %v297 = vmul.f32 %v289, %v72
    %v298 = vmul.f32 %v290, %v73
    %v299 = vmul.f32 %v291, %v74
    %v300 = vmul.f32 %v292, %v71
    %v301 = vmul.f32 %v293, %v72
    %v302 = vmul.f32 %v294, %v73
    %v303 = vmul.f32 %v295, %v74
    %v304 = vpack.c.bf16 %v297, %v296
    %v305 = vpack.c.bf16 %v299, %v298
    %v306 = vpack.c.bf16 %v301, %v300
    %v307 = vpack.c.bf16 %v303, %v302
    %v308 = vlaneseq
    %v309 = vshrl.u32 %v308, 7
    %v310 = vsub.s32 0, %v309
    %v311 = vrot.slane %v78, %v310
    %v313 = vsel %vm170, %v304, 0
    %v316 = vsel %vm170, %v305, 0
    %v319 = vsel %vm170, %v306, 0
    %v322 = vsel %vm170, %v307, 0
    %324 = vmatprep.subr.bf16.mxu0 0
    %325 = vmatpush1.bf16.msra.mxu0 %v56
    %326 = vmatprep.subr.bf16.mxu0 0
    %327 = vmatpush1.bf16.msra.mxu0 %v57
    %328 = vmatprep.subr.bf16.mxu0 0
    %329 = vmatpush1.bf16.msra.mxu0 %v58
    %330 = vmatprep.subr.bf16.mxu0 0
    %331 = vmatpush1.bf16.msra.mxu0 0
    %332 = vmatprep.subr.bf16.mxu0 0
    %333 = vmatpush1.bf16.msra.mxu0 0
    %334 = vmatprep.subr.bf16.mxu0 0
    %335 = vmatpush1.bf16.msra.mxu0 0
    %336 = vmatprep.subr.bf16.mxu0 0
    %337 = vmatpush1.bf16.msra.mxu0 0
    %338 = vmatprep.subr.bf16.mxu0 0
    %339 = vmatpush1.bf16.msra.mxu0 0
    %340 = vmatprep.subr.bf16.mxu0 0
    %341 = vmatpush1.bf16.msra.mxu0 0
    %342 = vmatprep.subr.bf16.mxu0 0
    %343 = vmatpush1.bf16.msra.mxu0 0
    %344 = vmatprep.subr.bf16.mxu0 0
    %345 = vmatpush1.bf16.msra.mxu0 0
    %346 = vmatprep.subr.bf16.mxu0 0
    %347 = vmatpush1.bf16.msra.mxu0 0
    %348 = vmatprep.subr.bf16.mxu0 0
    %349 = vmatpush1.bf16.msra.mxu0 0
    %350 = vmatprep.subr.bf16.mxu0 0
    %351 = vmatpush1.bf16.msra.mxu0 0
    %352 = vmatprep.subr.bf16.mxu0 0
    %353 = vmatpush1.bf16.msra.mxu0 0
    %354 = vmatprep.subr.bf16.mxu0 0
    %355 = vmatpush1.bf16.msra.mxu0 0
    %356 = vmatprep.mubr.bf16.mxu0 0
    %357 = vmatmul.mubr.bf16.gmra.mrb[0].mxu0 %v313
    %v358 = vpop.f32.mrb[0].mxu0
    %v359 = vadd.f32 %v311, %v358
    %v360 = vpop.f32.mrb[0].mxu0
    %v361 = vpop.f32.mrb[0].mxu0
    %v362 = vadd.f32 %v311, %v361
    %v363 = vpop.f32.mrb[0].mxu0
    %364 = vmatprep.mubr.bf16.mxu0 0
    %365 = vmatmul.mubr.bf16.gmra.mrb[0].mxu0 %v316
    %v366 = vpop.f32.mrb[0].mxu0
    %v367 = vadd.f32 %v311, %v366
    %v368 = vpop.f32.mrb[0].mxu0
    %v369 = vpop.f32.mrb[0].mxu0
    %v370 = vadd.f32 %v311, %v369
    %v371 = vpop.f32.mrb[0].mxu0
    %372 = vmatprep.mubr.bf16.mxu0 0
    %373 = vmatmul.mubr.bf16.gmra.mrb[0].mxu0 %v319
    %v374 = vpop.f32.mrb[0].mxu0
    %v375 = vadd.f32 %v311, %v374
    %v376 = vpop.f32.mrb[0].mxu0
    %v377 = vpop.f32.mrb[0].mxu0
    %v378 = vadd.f32 %v311, %v377
    %v379 = vpop.f32.mrb[0].mxu0
    %380 = vmatprep.mubr.bf16.mxu0 0
    %381 = vmatmul.mubr.bf16.gmra.mrb[0].mxu0 %v322
    %v382 = vpop.f32.mrb[0].mxu0
    %v383 = vadd.f32 %v311, %v382
    %v384 = vpop.f32.mrb[0].mxu0
    %v385 = vpop.f32.mrb[0].mxu0
    %v386 = vadd.f32 %v311, %v385
    %v387 = vpop.f32.mrb[0].mxu0
    %388 = vdwg.mxu0
    %v389 = vsub.f32 0.0, %v359
    %v390 = vsub.f32 0.0, %v362
    %v391 = vsub.f32 0.0, %v367
    %v392 = vsub.f32 0.0, %v370
    %v393 = vsub.f32 0.0, %v375
    %v394 = vsub.f32 0.0, %v378
    %v395 = vsub.f32 0.0, %v383
    %v396 = vsub.f32 0.0, %v386
    %v397 = vmul.f32 %v389, 1.442695
    %v398 = vpow.pop %v397
    %v399 = vmul.f32 %v390, 1.442695
    %v400 = vpow.pop %v399
    %v401 = vmul.f32 %v391, 1.442695
    %v402 = vpow.pop %v401
    %v403 = vmul.f32 %v392, 1.442695
    %v404 = vpow.pop %v403
    %v405 = vmul.f32 %v393, 1.442695
    %v406 = vpow.pop %v405
    %v407 = vmul.f32 %v394, 1.442695
    %v408 = vpow.pop %v407
    %v409 = vmul.f32 %v395, 1.442695
    %v410 = vpow.pop %v409
    %v411 = vmul.f32 %v396, 1.442695
    %v412 = vpow.pop %v411
    %v413 = vadd.f32 %v398, 1.0
    %v414 = vadd.f32 %v400, 1.0
    %v415 = vadd.f32 %v402, 1.0
    %v416 = vadd.f32 %v404, 1.0
    %v417 = vadd.f32 %v406, 1.0
    %v418 = vadd.f32 %v408, 1.0
    %v419 = vadd.f32 %v410, 1.0
    %v420 = vadd.f32 %v412, 1.0
    %v421 = vrcp.pop %v413
    %v422 = vrcp.pop %v414
    %v423 = vrcp.pop %v415
    %v424 = vrcp.pop %v416
    %v425 = vrcp.pop %v417
    %v426 = vrcp.pop %v418
    %v427 = vrcp.pop %v419
    %v428 = vrcp.pop %v420
    %v429 = vmul.f32 %v359, %v421
    %v430 = vmul.f32 %v362, %v422
    %v431 = vmul.f32 %v367, %v423
    %v432 = vmul.f32 %v370, %v424
    %v433 = vmul.f32 %v375, %v425
    %v434 = vmul.f32 %v378, %v426
    %v435 = vmul.f32 %v383, %v427
    %v436 = vmul.f32 %v386, %v428
    %v437 = vpack.c.bf16 %v430, %v429
    %v438 = vpack.c.bf16 %v432, %v431
    %v439 = vpack.c.bf16 %v434, %v433
    %v440 = vpack.c.bf16 %v436, %v435
    %v441 = vlaneseq
    %v442 = vshrl.u32 %v441, 7
    %v443 = vsub.s32 0, %v442
    %v444 = vrot.slane %v79, %v443
    %vm445 = vcmask 130048
    %v447 = vsel %vm445, %v437, 0
    %v450 = vsel %vm445, %v438, 0
    %v453 = vsel %vm445, %v439, 0
    %v456 = vsel %vm445, %v440, 0
    %458 = vmatprep.subr.bf16.mxu0 0
    %459 = vmatpush1.bf16.msra.mxu0 %v61
    %460 = vmatprep.subr.bf16.mxu0 0
    %461 = vmatpush1.bf16.msra.mxu0 0
    %462 = vmatprep.subr.bf16.mxu0 0
    %463 = vmatpush1.bf16.msra.mxu0 0
    %464 = vmatprep.subr.bf16.mxu0 0
    %465 = vmatpush1.bf16.msra.mxu0 0
    %466 = vmatprep.subr.bf16.mxu0 0
    %467 = vmatpush1.bf16.msra.mxu0 0
    %468 = vmatprep.subr.bf16.mxu0 0
    %469 = vmatpush1.bf16.msra.mxu0 0
    %470 = vmatprep.subr.bf16.mxu0 0
    %471 = vmatpush1.bf16.msra.mxu0 0
    %472 = vmatprep.subr.bf16.mxu0 0
    %473 = vmatpush1.bf16.msra.mxu0 0
    %474 = vmatprep.subr.bf16.mxu0 0
    %475 = vmatpush1.bf16.msra.mxu0 0
    %476 = vmatprep.subr.bf16.mxu0 0
    %477 = vmatpush1.bf16.msra.mxu0 0
    %478 = vmatprep.subr.bf16.mxu0 0
    %479 = vmatpush1.bf16.msra.mxu0 0
    %480 = vmatprep.subr.bf16.mxu0 0
    %481 = vmatpush1.bf16.msra.mxu0 0
    %482 = vmatprep.subr.bf16.mxu0 0
    %483 = vmatpush1.bf16.msra.mxu0 0
    %484 = vmatprep.subr.bf16.mxu0 0
    %485 = vmatpush1.bf16.msra.mxu0 0
    %486 = vmatprep.subr.bf16.mxu0 0
    %487 = vmatpush1.bf16.msra.mxu0 0
    %488 = vmatprep.subr.bf16.mxu0 0
    %489 = vmatpush1.bf16.msra.mxu0 0
    %490 = vmatprep.mubr.bf16.mxu0 0
    %491 = vmatmul.mubr.bf16.gmra.mrb[0].mxu0 %v447
    %v492 = vpop.f32.mrb[0].mxu0
    %v493 = vadd.f32 %v444, %v492
    %v494 = vpop.f32.mrb[0].mxu0
    %v495 = vpop.f32.mrb[0].mxu0
    %v496 = vadd.f32 %v444, %v495
    %v497 = vpop.f32.mrb[0].mxu0
    %498 = vmatprep.mubr.bf16.mxu0 0
    %499 = vmatmul.mubr.bf16.gmra.mrb[0].mxu0 %v450
    %v500 = vpop.f32.mrb[0].mxu0
    %v501 = vadd.f32 %v444, %v500
    %v502 = vpop.f32.mrb[0].mxu0
    %v503 = vpop.f32.mrb[0].mxu0
    %v504 = vadd.f32 %v444, %v503
    %v505 = vpop.f32.mrb[0].mxu0
    %506 = vmatprep.mubr.bf16.mxu0 0
    %507 = vmatmul.mubr.bf16.gmra.mrb[0].mxu0 %v453
    %v508 = vpop.f32.mrb[0].mxu0
    %v509 = vadd.f32 %v444, %v508
    %v510 = vpop.f32.mrb[0].mxu0
    %v511 = vpop.f32.mrb[0].mxu0
    %v512 = vadd.f32 %v444, %v511
    %v513 = vpop.f32.mrb[0].mxu0
    %514 = vmatprep.mubr.bf16.mxu0 0
    %515 = vmatmul.mubr.bf16.gmra.mrb[0].mxu0 %v456
    %v516 = vpop.f32.mrb[0].mxu0
    %v517 = vadd.f32 %v444, %v516
    %v518 = vpop.f32.mrb[0].mxu0
    %v519 = vpop.f32.mrb[0].mxu0
    %v520 = vadd.f32 %v444, %v519
    %v521 = vpop.f32.mrb[0].mxu0
    %522 = vdwg.mxu0
    %vm523 = vcmask 261120
    %v524 = vsel %vm523, %v493, 0.0
    %v525 = vsel %vm523, %v496, 0.0
    %v526 = vadd.f32 %v524, %v525
    %v527 = vsel %vm523, %v501, 0.0
    %v528 = vadd.f32 %v526, %v527
    %v529 = vsel %vm523, %v504, 0.0
    %v530 = vadd.f32 %v528, %v529
    %v531 = vrot.slane %v530, 4
    %v532 = vadd.f32 %v530, %v531
    %v533 = vrot.slane %v532, 2
    %v534 = vadd.f32 %v532, %v533
    %v535 = vrot.slane %v534, 1
    %v536 = vadd.f32 %v534, %v535
    %v537 = vsel %vm523, %v509, 0.0
    %v538 = vsel %vm523, %v512, 0.0
    %v539 = vadd.f32 %v537, %v538
    %v540 = vsel %vm523, %v517, 0.0
    %v541 = vadd.f32 %v539, %v540
    %v542 = vsel %vm523, %v520, 0.0
    %v543 = vadd.f32 %v541, %v542
    %v544 = vrot.slane %v543, 4
    %v545 = vadd.f32 %v543, %v544
    %v546 = vrot.slane %v545, 2
    %v547 = vadd.f32 %v545, %v546
    %v548 = vrot.slane %v547, 1
    %v549 = vadd.f32 %v547, %v548
    %v550 = vmul.f32 %v536, 0.03125
    %v551 = vmul.f32 %v549, 0.03125
    %v552 = vpack.c.bf16 %v550, %v550
    %v553 = vpack.c.bf16 %v551, %v551
    %v554 = vlaneseq
    %v555 = vshrl.u32 %v554, 7
    %v556 = vsub.s32 0, %v555
    %v557 = vrot.slane %v80, %v556
    %v560 = vunpack.c.l.b16 %v552
    %v561 = vunpack.c.l.b16 %v553
    %vm562 = vcmask 1041409
    %v563 = vsel %vm562, %v561, %v560
    %v564 = vpack.c.b16 %v563, %v563
    %v566 = vsel %vm523, %v564, 0
    %568 = vmatprep.subr.bf16.mxu0 0
    %569 = vmatpush1.bf16.msra.mxu0 %v66
    %570 = vmatprep.subr.bf16.mxu0 0
    %571 = vmatpush1.bf16.msra.mxu0 %v67
    %572 = vmatprep.subr.bf16.mxu0 0
    %573 = vmatpush1.bf16.msra.mxu0 0
    %574 = vmatprep.subr.bf16.mxu0 0
    %575 = vmatpush1.bf16.msra.mxu0 0
    %576 = vmatprep.subr.bf16.mxu0 0
    %577 = vmatpush1.bf16.msra.mxu0 0
    %578 = vmatprep.subr.bf16.mxu0 0
    %579 = vmatpush1.bf16.msra.mxu0 0
    %580 = vmatprep.subr.bf16.mxu0 0
    %581 = vmatpush1.bf16.msra.mxu0 0
    %582 = vmatprep.subr.bf16.mxu0 0
    %583 = vmatpush1.bf16.msra.mxu0 0
    %584 = vmatprep.subr.bf16.mxu0 0
    %585 = vmatpush1.bf16.msra.mxu0 0
    %586 = vmatprep.subr.bf16.mxu0 0
    %587 = vmatpush1.bf16.msra.mxu0 0
    %588 = vmatprep.subr.bf16.mxu0 0
    %589 = vmatpush1.bf16.msra.mxu0 0
    %590 = vmatprep.subr.bf16.mxu0 0
    %591 = vmatpush1.bf16.msra.mxu0 0
    %592 = vmatprep.subr.bf16.mxu0 0
    %593 = vmatpush1.bf16.msra.mxu0 0
    %594 = vmatprep.subr.bf16.mxu0 0
    %595 = vmatpush1.bf16.msra.mxu0 0
    %596 = vmatprep.subr.bf16.mxu0 0
    %597 = vmatpush1.bf16.msra.mxu0 0
    %598 = vmatprep.subr.bf16.mxu0 0
    %599 = vmatpush1.bf16.msra.mxu0 0
    %600 = vmatprep.mubr.bf16.mxu0 0
    %601 = vmatmul.mubr.bf16.gmra.mrb[0].mxu0 %v566
    %v602 = vpop.f32.mrb[0].mxu0
    %v603 = vadd.f32 %v557, %v602
    %v604 = vpop.f32.mrb[0].mxu0
    %v605 = vpop.f32.mrb[0].mxu0
    %v606 = vpop.f32.mrb[0].mxu0
    %607 = vdwg.mxu0
    %v608 = vsub.f32 0.0, %v603
    %v609 = vmul.f32 %v608, 1.442695
    %v610 = vpow.pop %v609
    %v611 = vadd.f32 %v610, 1.0
    %v612 = vrcp.pop %v611
    %v613 = vmul.f32 %v603, %v612
    %v614 = vpack.c.bf16 %v613, %v613
    %v615 = vlaneseq
    %v616 = vshrl.u32 %v615, 7
    %v617 = vsub.s32 0, %v616
    %v618 = vrot.slane %v81, %v617
    %v620 = vsel %vm445, %v614, 0
    %622 = vmatprep.subr.bf16.mxu0 0
    %623 = vmatpush1.bf16.msra.mxu0 %v70
    %624 = vmatprep.subr.bf16.mxu0 0
    %625 = vmatpush1.bf16.msra.mxu0 0
    %626 = vmatprep.subr.bf16.mxu0 0
    %627 = vmatpush1.bf16.msra.mxu0 0
    %628 = vmatprep.subr.bf16.mxu0 0
    %629 = vmatpush1.bf16.msra.mxu0 0
    %630 = vmatprep.subr.bf16.mxu0 0
    %631 = vmatpush1.bf16.msra.mxu0 0
    %632 = vmatprep.subr.bf16.mxu0 0
    %633 = vmatpush1.bf16.msra.mxu0 0
    %634 = vmatprep.subr.bf16.mxu0 0
    %635 = vmatpush1.bf16.msra.mxu0 0
    %636 = vmatprep.subr.bf16.mxu0 0
    %637 = vmatpush1.bf16.msra.mxu0 0
    %638 = vmatprep.subr.bf16.mxu0 0
    %639 = vmatpush1.bf16.msra.mxu0 0
    %640 = vmatprep.subr.bf16.mxu0 0
    %641 = vmatpush1.bf16.msra.mxu0 0
    %642 = vmatprep.subr.bf16.mxu0 0
    %643 = vmatpush1.bf16.msra.mxu0 0
    %644 = vmatprep.subr.bf16.mxu0 0
    %645 = vmatpush1.bf16.msra.mxu0 0
    %646 = vmatprep.subr.bf16.mxu0 0
    %647 = vmatpush1.bf16.msra.mxu0 0
    %648 = vmatprep.subr.bf16.mxu0 0
    %649 = vmatpush1.bf16.msra.mxu0 0
    %650 = vmatprep.subr.bf16.mxu0 0
    %651 = vmatpush1.bf16.msra.mxu0 0
    %652 = vmatprep.subr.bf16.mxu0 0
    %653 = vmatpush1.bf16.msra.mxu0 0
    %654 = vmatprep.mubr.bf16.mxu0 0
    %655 = vmatmul.mubr.bf16.gmra.mrb[0].mxu0 %v620
    %v656 = vpop.f32.mrb[0].mxu0
    %v657 = vadd.f32 %v618, %v656
    %v658 = vpop.f32.mrb[0].mxu0
    %v659 = vpop.f32.mrb[0].mxu0
    %v660 = vpop.f32.mrb[0].mxu0
    %661 = vdwg.mxu0
    %v662 = vsub.f32 0.0, %v657
    %v663 = vmul.f32 %v662, 1.442695
    %v664 = vpow.pop %v663
    %v665 = vadd.f32 %v664, 1.0
    %v666 = vrcp.pop %v665
    %v669 = vunpack.c.l.s4 1966171168
    %v670 = vunpack.c.0.s8 %v669
    %v671 = vlaneseq
    %v672 = vshrl.u32 %v671, 7
    %v673 = vsub.s32 %v670, %v672
    %v674 = vrot.slane %v666, %v673
    %v675 = vcombine.high %v674, %v674
    %v677 = vunpack.c.l.s4 1966171168
    %v678 = vunpack.c.0.s8 %v677
    %v679 = vlaneseq
    %v680 = vshrl.u32 %v679, 7
    %v681 = vsub.s32 %v678, %v680
    %v682 = vrot.slane %v674, %v681
    %v684 = vunpack.c.l.s4 1966171168
    %v685 = vunpack.c.0.s8 %v684
    %v686 = vlaneseq
    %v687 = vshrl.u32 %v686, 7
    %v688 = vsub.s32 %v685, %v687
    %v689 = vrot.slane %v675, %v688
    %v690 = vlaneseq
    %v691 = vshrl.u32 %v690, 7
    %v692 = vsub.s32 0, %v691
    %v693 = vrot.slane %v682, %v692
    %v694 = vlaneseq
    %v695 = vshrl.u32 %v694, 7
    %v696 = vsub.s32 0, %v695
    %v697 = vrot.slane %v689, %v696
    %v700 = vmul.f32 %v493, %v693
    %v701 = vmul.f32 %v496, %v693
    %v702 = vmul.f32 %v501, %v693
    %v703 = vmul.f32 %v504, %v693
    %v704 = vmul.f32 %v509, %v697
    %v705 = vmul.f32 %v512, %v697
    %v706 = vmul.f32 %v517, %v697
    %v707 = vmul.f32 %v520, %v697
    %716 = vrot.lane.b32.xlu0 %v82, 112
    %v717 = vpop.permute.xlu0 %716
    %718 = vrot.lane.b32.xlu0 %v83, 112
    %v719 = vpop.permute.xlu0 %718
    %720 = vrot.lane.b32.xlu0 %v84, 112
    %v721 = vpop.permute.xlu0 %720
    %722 = vrot.lane.b32.xlu0 %v85, 112
    %v723 = vpop.permute.xlu0 %722
    %724 = vrot.lane.b32.xlu0 %v86, 112
    %v725 = vpop.permute.xlu0 %724
    %726 = vrot.lane.b32.xlu0 %v87, 112
    %v727 = vpop.permute.xlu0 %726
    %728 = vrot.lane.b32.xlu0 %v88, 112
    %v729 = vpop.permute.xlu0 %728
    %730 = vrot.lane.b32.xlu0 %v89, 112
    %v731 = vpop.permute.xlu0 %730
    %v740 = vmax.f32 %v82, %v717
    %v741 = vmax.f32 %v83, %v719
    %v742 = vmax.f32 %v84, %v721
    %v743 = vmax.f32 %v85, %v723
    %v744 = vmax.f32 %v86, %v725
    %v745 = vmax.f32 %v87, %v727
    %v746 = vmax.f32 %v88, %v729
    %v747 = vmax.f32 %v89, %v731
    %756 = vrot.lane.b32.xlu0 %v740, 8
    %v757 = vpop.permute.xlu0 %756
    %758 = vrot.lane.b32.xlu0 %v741, 8
    %v759 = vpop.permute.xlu0 %758
    %760 = vrot.lane.b32.xlu0 %v742, 8
    %v761 = vpop.permute.xlu0 %760
    %762 = vrot.lane.b32.xlu0 %v743, 8
    %v763 = vpop.permute.xlu0 %762
    %764 = vrot.lane.b32.xlu0 %v744, 8
    %v765 = vpop.permute.xlu0 %764
    %766 = vrot.lane.b32.xlu0 %v745, 8
    %v767 = vpop.permute.xlu0 %766
    %768 = vrot.lane.b32.xlu0 %v746, 8
    %v769 = vpop.permute.xlu0 %768
    %770 = vrot.lane.b32.xlu0 %v747, 8
    %v771 = vpop.permute.xlu0 %770
    %vm780 = vcmask 64512
    %v781 = vsel %vm780, 0.0, %v757
    %v782 = vsel %vm780, 0.0, %v759
    %v783 = vsel %vm780, 0.0, %v761
    %v784 = vsel %vm780, 0.0, %v763
    %v785 = vsel %vm780, 0.0, %v765
    %v786 = vsel %vm780, 0.0, %v767
    %v787 = vsel %vm780, 0.0, %v769
    %v788 = vsel %vm780, 0.0, %v771
    %vm789 = vcmask 195584
    %v790 = vsel %vm789, %v781, 0.0
    %v791 = vsel %vm789, %v782, 0.0
    %v792 = vsel %vm789, %v783, 0.0
    %v793 = vsel %vm789, %v784, 0.0
    %v794 = vsel %vm789, %v785, 0.0
    %v795 = vsel %vm789, %v786, 0.0
    %v796 = vsel %vm789, %v787, 0.0
    %v797 = vsel %vm789, %v788, 0.0
    %v798 = vadd.f32 %v700, %v790
    %v799 = vadd.f32 %v701, %v791
    %v800 = vadd.f32 %v702, %v792
    %v801 = vadd.f32 %v703, %v793
    %v802 = vadd.f32 %v704, %v794
    %v803 = vadd.f32 %v705, %v795
    %v804 = vadd.f32 %v706, %v796
    %v805 = vadd.f32 %v707, %v797
    %v806 = vsel %vm523, %v798, 0.0
    %v807 = vsel %vm523, %v799, 0.0
    %v808 = vsel %vm523, %v800, 0.0
    %v809 = vsel %vm523, %v801, 0.0
    %v810 = vsel %vm523, %v802, 0.0
    %v811 = vsel %vm523, %v803, 0.0
    %v812 = vsel %vm523, %v804, 0.0
    %v813 = vsel %vm523, %v805, 0.0
    %814 = vst [vmem:[#allocation7] sm:$0xff] %v806
    %815 = vst [vmem:[#allocation7 + $0x8] sm:$0xff] %v807
    %816 = vst [vmem:[#allocation7 + $0x10] sm:$0xff] %v808
    %817 = vst [vmem:[#allocation7 + $0x18] sm:$0xff] %v809
    %818 = vst [vmem:[#allocation7 + $0x20] sm:$0xff] %v810
    %819 = vst [vmem:[#allocation7 + $0x28] sm:$0xff] %v811
    %820 = vst [vmem:[#allocation7 + $0x30] sm:$0xff] %v812
    %821 = vst [vmem:[#allocation7 + $0x38] sm:$0xff] %v813
    // Predicated region
    $region18: #{tpu_custom_call.1} parent=1 // pred_check
      _
    $region19: #{tpu_custom_call.1} parent=1 // pred_check_branch
      %823 = sbr.rel (0) target = $region21
    $region20: #{tpu_custom_call.1} parent=1 // pred_region
      %s825 = ssub.s32 1024, 1024
      %826 = vsyncadd [#allocation4], %s825
      %s827 = sshll.u32 [#allocation7], 4
      %s828 = int_to_ptr.vmem [resolvable:$true] %s827
      %833 = dma.vmem_to_hbm [thread:$0]  %s828, 1024, %s2, [#allocation4], 128, 128, 8
    $region21: #{tpu_custom_call.1} parent=1 // pred_fallthru
      _
    // Predicated region
    $region22: #{tpu_custom_call.1} parent=1 // pred_check
      _
    $region23: #{tpu_custom_call.1} parent=1 // pred_check_branch
      %835 = sbr.rel (0) target = $region25
    $region24: #{tpu_custom_call.1} parent=1 // pred_region
      %836 = dma.done [#allocation4], 1024
    $region25: #{tpu_custom_call.1} parent=1 // pred_fallthru
      _
    %837 = vsyncpa [#allocation3], 1
    %838 = vsyncpa [#allocation6], 1
    %839 = vsyncpa [#allocation4], 1

</llo_original>
